<compile_context>
chip_gen: v7x
topology: tpu7x:2x2x1
jax: 0.10.0
libtpu: 0.0.40
codegen_flags: <defaults>
</compile_context>

<pallas_src>
import math

import jax
import jax.numpy as jnp
from jax.experimental import pallas as pl
from jax.experimental.pallas import tpu as pltpu

LEAKY_SLOPE = 0.01  # F.leaky_relu default negative_slope
LANES = 128         # TPU vreg lane width


def _round_up(n, m):
    return (n + m - 1) // m * m


def _leaky_relu(x):
    return jnp.where(x > 0, x, LEAKY_SLOPE * x)


def critic_kernel(x_ref, w1_ref, b1_ref, w2_ref, b2_ref, w3_ref, b3_ref, o_ref):
    # x_ref : (o_size, tile_b)  bf16   (batch in lanes)
    # w1_ref: (h_size, o_size)  bf16   w2_ref: (h_size, h_size) bf16
    # b1_ref/b2_ref: (h_size, 1) f32   w3_ref: (h_size, 1) f32
    # b3_ref: (1,) f32 in SMEM         o_ref : (1, tile_b) f32
    x = x_ref[...]

    # Layer 1 (MXU, bf16 in / f32 accumulate), bias + activation in f32 (VPU).
    h1 = jnp.dot(w1_ref[...], x, preferred_element_type=jnp.float32) + b1_ref[...]
    h1 = _leaky_relu(h1)

    # Layer 2 (MXU).
    h2 = jnp.dot(w2_ref[...], h1.astype(jnp.bfloat16),
                 preferred_element_type=jnp.float32) + b2_ref[...]
    h2 = _leaky_relu(h2)

    # Layer 3 (out_features == 1): VPU multiply + XLU sublane reduction; frees
    # the MXU from a mostly-padding (1 x h) pass and keeps f32 precision.
    out = jnp.sum(h2 * w3_ref[...], axis=0, keepdims=True) + b3_ref[0]

    o_ref[...] = out.astype(o_ref.dtype)  # (1, tile_b) lane-dense store


def critic_forward(x, params, *, tile_b=None):
    """x: (B, o_size) float32 (torch layout). params: dict from init_critic_params."""
    B, o_size = x.shape
    h_size = params["w1"].shape[0]

    # Pad batch to a lane multiple; pick a bounded tile that (when possible)
    # yields >= 2 grid steps so v7x's two TensorCores both get work and the
    # x-tile DMA pipelines against compute.
    b_pad = _round_up(B, LANES)
    if tile_b is None:
        tile_b = min(512, max(LANES, b_pad // 2))
    tile_b = min(_round_up(tile_b, LANES), _round_up(b_pad, LANES))
    b_pad = _round_up(b_pad, tile_b)
    grid = (b_pad // tile_b,)

    # Batch-in-lanes activation layout, bf16 on the MXU input path.
    xt = jnp.pad(x.T.astype(jnp.bfloat16), ((0, 0), (0, b_pad - B)))

    w1 = params["w1"].astype(jnp.bfloat16)   # (h, o)
    w2 = params["w2"].astype(jnp.bfloat16)   # (h, h)
    b1 = params["b1"]                        # (h, 1) f32
    b2 = params["b2"]                        # (h, 1) f32
    w3 = params["w3"]                        # (h, 1) f32 (VPU path)
    b3 = params["b3"]                        # (1,)   f32 (SMEM scalar)

    flops = 2 * b_pad * (o_size * h_size + h_size * h_size + h_size)
    bytes_accessed = (xt.size * 2 + w1.size * 2 + w2.size * 2
                      + (b1.size + b2.size + w3.size + b3.size) * 4
                      + b_pad * 4)

    out_pad = pl.pallas_call(
        critic_kernel,
        out_shape=jax.ShapeDtypeStruct((1, b_pad), jnp.float32),
        grid_spec=pltpu.PrefetchScalarGridSpec(
            num_scalar_prefetch=0,
            grid=grid,
            in_specs=[
                pl.BlockSpec((o_size, tile_b), lambda i: (0, i)),     # x tile
                pl.BlockSpec((h_size, o_size), lambda i: (0, 0)),     # w1 (resident)
                pl.BlockSpec((h_size, 1), lambda i: (0, 0)),          # b1
                pl.BlockSpec((h_size, h_size), lambda i: (0, 0)),     # w2 (resident)
                pl.BlockSpec((h_size, 1), lambda i: (0, 0)),          # b2
                pl.BlockSpec((h_size, 1), lambda i: (0, 0)),          # w3 column
                pl.BlockSpec(memory_space=pltpu.MemorySpace.SMEM),    # b3 scalar
            ],
            out_specs=pl.BlockSpec((1, tile_b), lambda i: (0, i)),    # lane-dense out
        ),
        compiler_params=pltpu.CompilerParams(
            dimension_semantics=("parallel",),
        ),
        cost_estimate=pl.CostEstimate(
            flops=flops, transcendentals=0, bytes_accessed=bytes_accessed),
    )(xt, w1, b1, w2, b2, w3, b3)

    # Back to torch layout (B, 1), dropping batch padding.
    return out_pad[0, :B].reshape(B, 1)


def _xavier_uniform(key, out_f, in_f, gain):
    # matches torch.nn.init.xavier_uniform_ on a (out_f, in_f) weight
    bound = gain * math.sqrt(6.0 / (in_f + out_f))
    return jax.random.uniform(key, (out_f, in_f), minval=-bound, maxval=bound,
                              dtype=jnp.float32)


def init_critic_params(key, o_size, h_size):
    gain_lrelu = math.sqrt(2.0 / (1.0 + LEAKY_SLOPE ** 2))  # calculate_gain('leaky_relu')
    k1, k2, k3 = jax.random.split(key, 3)
    return {
        "w1": _xavier_uniform(k1, h_size, o_size, gain_lrelu),   # (h, o)
        "b1": jnp.zeros((h_size, 1), jnp.float32),
        "w2": _xavier_uniform(k2, h_size, h_size, gain_lrelu),   # (h, h)
        "b2": jnp.zeros((h_size, 1), jnp.float32),
        # output layer weight kept as a column (h, 1); gain = 1.0 ('linear')
        "w3": _xavier_uniform(k3, 1, h_size, 1.0).T,             # (h, 1)
        "b3": jnp.zeros((1,), jnp.float32),
    }


def critic_reference(x, p):
    # Pure-JAX reference mirroring the kernel's bf16 matmul / f32 accumulate path.
    bf = jnp.bfloat16
    h1 = jnp.dot(x.astype(bf), p["w1"].astype(bf).T,
                 preferred_element_type=jnp.float32) + p["b1"][:, 0]
    h1 = _leaky_relu(h1)
    h2 = jnp.dot(h1.astype(bf), p["w2"].astype(bf).T,
                 preferred_element_type=jnp.float32) + p["b2"][:, 0]
    h2 = _leaky_relu(h2)
    return jnp.dot(h2, p["w3"]) + p["b3"][0]


if __name__ == "__main__":
    O_SIZE, H_SIZE = 16, 32

    key = jax.random.PRNGKey(0)
    kx, kp = jax.random.split(key)
    params = init_critic_params(kp, O_SIZE, H_SIZE)

    # B=256 -> 2-step parallel grid (pipelining / both v7x TCs); B=8 exercises
    # the ragged-batch padding path.
    for b in (256, 8):
        x = jax.random.normal(jax.random.fold_in(kx, b), (b, O_SIZE), dtype=jnp.float32)
        out = jax.block_until_ready(critic_forward(x, params))
        ref = critic_reference(x, params)
        assert out.shape == (b, 1)
        assert jnp.allclose(out, ref, atol=1e-4, rtol=1e-4), f"mismatch vs reference (B={b})"

    print("KERNEL_OK")
</pallas_src>

<mosaic_0001>
module attributes {stable_mosaic.version = 11 : i64} {
  func.func @critic_kernel(%arg0: i32, %arg1: memref<16x128xbf16, #tpu.memory_space<vmem>>, %arg2: memref<32x16xbf16, #tpu.memory_space<vmem>>, %arg3: memref<32x1xf32, #tpu.memory_space<vmem>>, %arg4: memref<32x32xbf16, #tpu.memory_space<vmem>>, %arg5: memref<32x1xf32, #tpu.memory_space<vmem>>, %arg6: memref<32x1xf32, #tpu.memory_space<vmem>>, %arg7: memref<1xf32, #tpu.memory_space<smem>>, %arg8: memref<1x128xf32, #tpu.memory_space<vmem>>) attributes {dimension_semantics = [#tpu.dimension_semantics<parallel>], iteration_bounds = array<i64: 2>, scalar_prefetch = 0 : i64, scratch_operands = 0 : i64, tpu.core_type = #tpu.core_type<tc>, window_params = [{transform_indices = @transform_0, window_bounds = array<i64: 16, 128>}, {pipeline_mode = #tpu.pipeline_mode<synchronous>, transform_indices = @transform_1, window_bounds = array<i64: 32, 16>}, {pipeline_mode = #tpu.pipeline_mode<synchronous>, transform_indices = @transform_2, window_bounds = array<i64: 32, 1>}, {pipeline_mode = #tpu.pipeline_mode<synchronous>, transform_indices = @transform_3, window_bounds = array<i64: 32, 32>}, {pipeline_mode = #tpu.pipeline_mode<synchronous>, transform_indices = @transform_4, window_bounds = array<i64: 32, 1>}, {pipeline_mode = #tpu.pipeline_mode<synchronous>, transform_indices = @transform_5, window_bounds = array<i64: 32, 1>}, {transform_indices = @transform_6, window_bounds = array<i64: 1>}, {transform_indices = @transform_7, window_bounds = array<i64: 1, 128>}]} {
    %c0 = arith.constant 0 : index
    %c0_0 = arith.constant 0 : index
    %0 = vector.load %arg1[%c0, %c0_0] : memref<16x128xbf16, #tpu.memory_space<vmem>>, vector<16x128xbf16>
    %c0_1 = arith.constant 0 : index
    %c0_2 = arith.constant 0 : index
    %1 = vector.load %arg2[%c0_1, %c0_2] : memref<32x16xbf16, #tpu.memory_space<vmem>>, vector<32x16xbf16>
    %cst = arith.constant dense<0.000000e+00> : vector<32x128xf32>
    %2 = tpu.matmul %1, %0, %cst {dimension_numbers = #tpu.dot_dimension_numbers<[1], [0], [0], [1], [0, 0, 1, 1], [], []>} : vector<32x16xbf16>, vector<16x128xbf16>, vector<32x128xf32> -> vector<32x128xf32>
    %c0_3 = arith.constant 0 : index
    %c0_4 = arith.constant 0 : index
    %3 = vector.load %arg3[%c0_3, %c0_4] : memref<32x1xf32, #tpu.memory_space<vmem>>, vector<32x1xf32>
    %4 = vector.broadcast %3 : vector<32x1xf32> to vector<32x128xf32>
    %5 = arith.addf %2, %4 : vector<32x128xf32>
    %cst_5 = arith.constant 0.000000e+00 : f32
    %6 = vector.broadcast %cst_5 : f32 to vector<32x128xf32>
    %7 = arith.cmpf ogt, %5, %6 : vector<32x128xf32>
    %cst_6 = arith.constant 0.00999999977 : f32
    %8 = vector.broadcast %cst_6 : f32 to vector<32x128xf32>
    %9 = arith.mulf %8, %5 : vector<32x128xf32>
    %10 = arith.select %7, %5, %9 : vector<32x128xi1>, vector<32x128xf32>
    %c0_7 = arith.constant 0 : index
    %c0_8 = arith.constant 0 : index
    %11 = vector.load %arg4[%c0_7, %c0_8] : memref<32x32xbf16, #tpu.memory_space<vmem>>, vector<32x32xbf16>
    %12 = arith.truncf %10 : vector<32x128xf32> to vector<32x128xbf16>
    %cst_9 = arith.constant dense<0.000000e+00> : vector<32x128xf32>
    %13 = tpu.matmul %11, %12, %cst_9 {dimension_numbers = #tpu.dot_dimension_numbers<[1], [0], [0], [1], [0, 0, 1, 1], [], []>} : vector<32x32xbf16>, vector<32x128xbf16>, vector<32x128xf32> -> vector<32x128xf32>
    %c0_10 = arith.constant 0 : index
    %c0_11 = arith.constant 0 : index
    %14 = vector.load %arg5[%c0_10, %c0_11] : memref<32x1xf32, #tpu.memory_space<vmem>>, vector<32x1xf32>
    %15 = vector.broadcast %14 : vector<32x1xf32> to vector<32x128xf32>
    %16 = arith.addf %13, %15 : vector<32x128xf32>
    %cst_12 = arith.constant 0.000000e+00 : f32
    %17 = vector.broadcast %cst_12 : f32 to vector<32x128xf32>
    %18 = arith.cmpf ogt, %16, %17 : vector<32x128xf32>
    %cst_13 = arith.constant 0.00999999977 : f32
    %19 = vector.broadcast %cst_13 : f32 to vector<32x128xf32>
    %20 = arith.mulf %19, %16 : vector<32x128xf32>
    %21 = arith.select %18, %16, %20 : vector<32x128xi1>, vector<32x128xf32>
    %c0_14 = arith.constant 0 : index
    %c0_15 = arith.constant 0 : index
    %22 = vector.load %arg6[%c0_14, %c0_15] : memref<32x1xf32, #tpu.memory_space<vmem>>, vector<32x1xf32>
    %23 = vector.broadcast %22 : vector<32x1xf32> to vector<32x128xf32>
    %24 = arith.mulf %21, %23 : vector<32x128xf32>
    %cst_16 = arith.constant dense<0.000000e+00> : vector<128xf32>
    %25 = vector.multi_reduction <add>, %24, %cst_16 [0] : vector<32x128xf32> to vector<128xf32>
    %26 = vector.shape_cast %25 : vector<128xf32> to vector<1x128xf32>
    %c0_17 = arith.constant 0 : index
    %27 = memref.load %arg7[%c0_17] : memref<1xf32, #tpu.memory_space<smem>>
    %28 = vector.broadcast %27 : f32 to vector<1x128xf32>
    %29 = arith.addf %26, %28 : vector<1x128xf32>
    %c0_18 = arith.constant 0 : index
    %c0_19 = arith.constant 0 : index
    %30 = vector.load %arg8[%c0_18, %c0_19] : memref<1x128xf32, #tpu.memory_space<vmem>>, vector<1x128xf32>
    tpu.vector_store %arg8[%c0_18, %c0_19], %29 {strides = array<i32>} : memref<1x128xf32, #tpu.memory_space<vmem>>, vector<1x128xf32>,
    return
  }
  func.func @transform_0(%arg0: i32) -> (i32, i32) {
    %c0_i32 = arith.constant 0 : i32
    %c0_i32_0 = arith.constant 0 : i32
    return %c0_i32, %arg0 : i32, i32
  }
  func.func @transform_1(%arg0: i32) -> (i32, i32) {
    %c0_i32 = arith.constant 0 : i32
    %c0_i32_0 = arith.constant 0 : i32
    %c0_i32_1 = arith.constant 0 : i32
    return %c0_i32, %c0_i32_0 : i32, i32
  }
  func.func @transform_2(%arg0: i32) -> (i32, i32) {
    %c0_i32 = arith.constant 0 : i32
    %c0_i32_0 = arith.constant 0 : i32
    %c0_i32_1 = arith.constant 0 : i32
    return %c0_i32, %c0_i32_0 : i32, i32
  }
  func.func @transform_3(%arg0: i32) -> (i32, i32) {
    %c0_i32 = arith.constant 0 : i32
    %c0_i32_0 = arith.constant 0 : i32
    %c0_i32_1 = arith.constant 0 : i32
    return %c0_i32, %c0_i32_0 : i32, i32
  }
  func.func @transform_4(%arg0: i32) -> (i32, i32) {
    %c0_i32 = arith.constant 0 : i32
    %c0_i32_0 = arith.constant 0 : i32
    %c0_i32_1 = arith.constant 0 : i32
    return %c0_i32, %c0_i32_0 : i32, i32
  }
  func.func @transform_5(%arg0: i32) -> (i32, i32) {
    %c0_i32 = arith.constant 0 : i32
    %c0_i32_0 = arith.constant 0 : i32
    %c0_i32_1 = arith.constant 0 : i32
    return %c0_i32, %c0_i32_0 : i32, i32
  }
  func.func @transform_6(%arg0: i32) -> i32 {
    %c0_i32 = arith.constant 0 : i32
    %c0_i32_0 = arith.constant 0 : i32
    return %c0_i32 : i32
  }
  func.func @transform_7(%arg0: i32) -> (i32, i32) {
    %c0_i32 = arith.constant 0 : i32
    %c0_i32_0 = arith.constant 0 : i32
    return %c0_i32, %arg0 : i32, i32
  }
}

</mosaic_0001>

<llo_original>
// kernel: tpu_custom_call.1
$region0: #{tpu_custom_call.1}
  #allocation0 [shape = 'u32[]', space=smem, size = 0x4, offset = 0x4, fixed_abs, tag = 'smem constant byte address 0x4 - core index']
  #allocation1 [shape = 'u32[144,128]{1,0:T(1,128)}', space=vmem, size = 0x12000, scoped, tag = 'internal scratch']
  #allocation2 [shape = 'f32[1]{0:T(128)S(6)}', space=smem, size = 0x200, scoped, tag = 'scoped memory for tpu_custom_call.1']
  %s0 = inlined_call_operand.vmem [shape: bf16[16,256], index: 0, kind: input, shape index: {}]
  %s1 = inlined_call_operand.vmem [shape: bf16[32,16], index: 1, kind: input, shape index: {}]
  %s2 = inlined_call_operand.vmem [shape: f32[32,1], index: 2, kind: input, shape index: {}]
  %s3 = inlined_call_operand.vmem [shape: bf16[32,32], index: 3, kind: input, shape index: {}]
  %s4 = inlined_call_operand.vmem [shape: f32[32,1], index: 4, kind: input, shape index: {}]
  %s5 = inlined_call_operand.vmem [shape: f32[32,1], index: 5, kind: input, shape index: {}]
  %s6 = inlined_call_operand.<no memory space> [shape: f32[1], index: 6, kind: input, shape index: {}]
  %s7 = inlined_call_operand.hbm [shape: f32[1,256], index: 7, kind: output, shape index: {}]
  %s8 = sld [smem:[#allocation0]]
  $region102: #{tpu_custom_call.1} parent=0
    _
  %s10 = ssub.s32 1, %s8
  %s11 = scalar_select 0, %s10, %s8
  %12 = sst [smem:[#allocation2]] %s6
  $region1: #{tpu_custom_call.1} parent=0
    #allocation3 [shape = 'u8[8192]{0}', space=vmem, size = 0x2000, scoped, tag = 'input window, operand 0']
    #allocation4 [shape = 'u8[1024]{0}', space=vmem, size = 0x400, scoped, tag = 'output window, operand 0']
    #allocation5 [shape = 's32[2]{0}', space=sflag, size = 0x8, scoped, tag = 'scoped memory for tpu_custom_call.1']
    %13 = vsyncpa [#allocation5], 0
    %s14 = scalar_lea.sflag [#allocation5], 1
    %15 = vsyncpa %s14, 0
    loop: start=0, step=1, limit=4
    $region2: #{tpu_custom_call.1} parent=1 // loop_pre_header
      _
    $region3: #{tpu_custom_call.1} parent=1 // loop_header
      %s17 = sphi 0, %s21
      %p18 = scmp.ge.s32.totalorder %s17, 4
      %s27 = sphi 0, %s29
      %s30 = sphi 0, %s27
      %s31 = sphi 0, %s30
      %s47 = sphi 0, %s31
      %s51 = sphi 0, %s51
      %s53 = sphi 0, %s51
      %s54 = sphi 0, %s53
      %s68 = sphi 0, %s54
      %s72 = sphi 0, %s72
      %s74 = sphi 0, %s72
      %s75 = sphi 0, %s74
      %s89 = sphi 0, %s75
      %s93 = sphi 0, %s93
      %s95 = sphi 0, %s93
      %s96 = sphi 0, %s95
      %s110 = sphi 0, %s96
      %s114 = sphi 0, %s114
      %s116 = sphi 0, %s114
      %s117 = sphi 0, %s116
      %s131 = sphi 0, %s117
      %s135 = sphi 0, %s135
      %s137 = sphi 0, %s135
      %s138 = sphi 0, %s137
      %s152 = sphi 0, %s138
      %s156 = sphi 0, %s156
      %s158 = sphi 0, %s156
      %s159 = sphi 0, %s158
      %s173 = sphi 0, %s159
      %s179 = sphi 0, %s181
      %s182 = sphi 0, %s179
      %s183 = sphi 0, %s182
      %s199 = sphi 0, %s183
    $region4: #{tpu_custom_call.1} parent=1 // loop_header_branch
      %20 = sbr.rel (%p18) target = $region8
    $region5: #{tpu_custom_call.1} parent=1 // loop_body
      %s22 = ssub.s32 %s17, 1
      %s23 = ssub.s32 %s17, 2
      %s24 = sadd.s32 %s17, 1
      %s25 = ssub.s32 %s17, %s24
      %p26 = scmp.eq.s32.totalorder %s25, 0
      %s28 = sadd.s32 %s27, 1
      %s29 = scalar_select %p26, %s27, %s28
      %p32 = pneg %p26
      %p33 = scmp.eq.s32.totalorder %s17, 1
      %p34 = por %p32, %p33
      %p35 = scmp.ne.s32.totalorder %s27, %s30
      %p36 = scmp.eq.s32.totalorder %s17, 0
      %p37 = por %p35, %p36
      %p38 = scmp.ne.s32.totalorder %s27, %s30
      %p39 = scmp.eq.s32.totalorder %s22, 1
      %p40 = por %p38, %p39
      %p41 = scmp.ne.s32.totalorder %s30, %s31
      %p42 = scmp.eq.s32.totalorder %s22, 0
      %p43 = por %p41, %p42
      %p44 = scmp.ne.s32.totalorder %s30, %s31
      %p45 = scmp.eq.s32.totalorder %s23, 1
      %p46 = por %p44, %p45
      %p48 = scmp.ne.s32.totalorder %s31, %s47
      %p49 = scmp.eq.s32.totalorder %s23, 0
      %p50 = por %p48, %p49
      %s52 = sadd.s32 %s51, 1
      %p55 = scmp.eq.s32.totalorder %s17, 1
      %p56 = scmp.ne.s32.totalorder %s51, %s53
      %p57 = scmp.eq.s32.totalorder %s17, 0
      %p58 = por %p56, %p57
      %p59 = scmp.ne.s32.totalorder %s51, %s53
      %p60 = scmp.eq.s32.totalorder %s22, 1
      %p61 = por %p59, %p60
      %p62 = scmp.ne.s32.totalorder %s53, %s54
      %p63 = scmp.eq.s32.totalorder %s22, 0
      %p64 = por %p62, %p63
      %p65 = scmp.ne.s32.totalorder %s53, %s54
      %p66 = scmp.eq.s32.totalorder %s23, 1
      %p67 = por %p65, %p66
      %p69 = scmp.ne.s32.totalorder %s54, %s68
      %p70 = scmp.eq.s32.totalorder %s23, 0
      %p71 = por %p69, %p70
      %s73 = sadd.s32 %s72, 1
      %p76 = scmp.eq.s32.totalorder %s17, 1
      %p77 = scmp.ne.s32.totalorder %s72, %s74
      %p78 = scmp.eq.s32.totalorder %s17, 0
      %p79 = por %p77, %p78
      %p80 = scmp.ne.s32.totalorder %s72, %s74
      %p81 = scmp.eq.s32.totalorder %s22, 1
      %p82 = por %p80, %p81
      %p83 = scmp.ne.s32.totalorder %s74, %s75
      %p84 = scmp.eq.s32.totalorder %s22, 0
      %p85 = por %p83, %p84
      %p86 = scmp.ne.s32.totalorder %s74, %s75
      %p87 = scmp.eq.s32.totalorder %s23, 1
      %p88 = por %p86, %p87
      %p90 = scmp.ne.s32.totalorder %s75, %s89
      %p91 = scmp.eq.s32.totalorder %s23, 0
      %p92 = por %p90, %p91
      %s94 = sadd.s32 %s93, 1
      %p97 = scmp.eq.s32.totalorder %s17, 1
      %p98 = scmp.ne.s32.totalorder %s93, %s95
      %p99 = scmp.eq.s32.totalorder %s17, 0
      %p100 = por %p98, %p99
      %p101 = scmp.ne.s32.totalorder %s93, %s95
      %p102 = scmp.eq.s32.totalorder %s22, 1
      %p103 = por %p101, %p102
      %p104 = scmp.ne.s32.totalorder %s95, %s96
      %p105 = scmp.eq.s32.totalorder %s22, 0
      %p106 = por %p104, %p105
      %p107 = scmp.ne.s32.totalorder %s95, %s96
      %p108 = scmp.eq.s32.totalorder %s23, 1
      %p109 = por %p107, %p108
      %p111 = scmp.ne.s32.totalorder %s96, %s110
      %p112 = scmp.eq.s32.totalorder %s23, 0
      %p113 = por %p111, %p112
      %s115 = sadd.s32 %s114, 1
      %p118 = scmp.eq.s32.totalorder %s17, 1
      %p119 = scmp.ne.s32.totalorder %s114, %s116
      %p120 = scmp.eq.s32.totalorder %s17, 0
      %p121 = por %p119, %p120
      %p122 = scmp.ne.s32.totalorder %s114, %s116
      %p123 = scmp.eq.s32.totalorder %s22, 1
      %p124 = por %p122, %p123
      %p125 = scmp.ne.s32.totalorder %s116, %s117
      %p126 = scmp.eq.s32.totalorder %s22, 0
      %p127 = por %p125, %p126
      %p128 = scmp.ne.s32.totalorder %s116, %s117
      %p129 = scmp.eq.s32.totalorder %s23, 1
      %p130 = por %p128, %p129
      %p132 = scmp.ne.s32.totalorder %s117, %s131
      %p133 = scmp.eq.s32.totalorder %s23, 0
      %p134 = por %p132, %p133
      %s136 = sadd.s32 %s135, 1
      %p139 = scmp.eq.s32.totalorder %s17, 1
      %p140 = scmp.ne.s32.totalorder %s135, %s137
      %p141 = scmp.eq.s32.totalorder %s17, 0
      %p142 = por %p140, %p141
      %p143 = scmp.ne.s32.totalorder %s135, %s137
      %p144 = scmp.eq.s32.totalorder %s22, 1
      %p145 = por %p143, %p144
      %p146 = scmp.ne.s32.totalorder %s137, %s138
      %p147 = scmp.eq.s32.totalorder %s22, 0
      %p148 = por %p146, %p147
      %p149 = scmp.ne.s32.totalorder %s137, %s138
      %p150 = scmp.eq.s32.totalorder %s23, 1
      %p151 = por %p149, %p150
      %p153 = scmp.ne.s32.totalorder %s138, %s152
      %p154 = scmp.eq.s32.totalorder %s23, 0
      %p155 = por %p153, %p154
      %s157 = sadd.s32 %s156, 1
      %p160 = scmp.eq.s32.totalorder %s17, 1
      %p161 = scmp.ne.s32.totalorder %s156, %s158
      %p162 = scmp.eq.s32.totalorder %s17, 0
      %p163 = por %p161, %p162
      %p164 = scmp.ne.s32.totalorder %s156, %s158
      %p165 = scmp.eq.s32.totalorder %s22, 1
      %p166 = por %p164, %p165
      %p167 = scmp.ne.s32.totalorder %s158, %s159
      %p168 = scmp.eq.s32.totalorder %s22, 0
      %p169 = por %p167, %p168
      %p170 = scmp.ne.s32.totalorder %s158, %s159
      %p171 = scmp.eq.s32.totalorder %s23, 1
      %p172 = por %p170, %p171
      %p174 = scmp.ne.s32.totalorder %s159, %s173
      %p175 = scmp.eq.s32.totalorder %s23, 0
      %p176 = por %p174, %p175
      %s177 = ssub.s32 %s17, %s24
      %p178 = scmp.eq.s32.totalorder %s177, 0
      %s180 = sadd.s32 %s179, 1
      %s181 = scalar_select %p178, %s179, %s180
      %p184 = pneg %p178
      %p185 = scmp.eq.s32.totalorder %s17, 1
      %p186 = por %p184, %p185
      %p187 = scmp.ne.s32.totalorder %s179, %s182
      %p188 = scmp.eq.s32.totalorder %s17, 0
      %p189 = por %p187, %p188
      %p190 = scmp.ne.s32.totalorder %s179, %s182
      %p191 = scmp.eq.s32.totalorder %s22, 1
      %p192 = por %p190, %p191
      %p193 = scmp.ne.s32.totalorder %s182, %s183
      %p194 = scmp.eq.s32.totalorder %s22, 0
      %p195 = por %p193, %p194
      %p196 = scmp.ne.s32.totalorder %s182, %s183
      %p197 = scmp.eq.s32.totalorder %s23, 1
      %p198 = por %p196, %p197
      %p200 = scmp.ne.s32.totalorder %s183, %s199
      %p201 = scmp.eq.s32.totalorder %s23, 0
      %p202 = por %p200, %p201
      %p203 = scmp.le.s32.totalorder 1, %s17
      %p204 = scmp.lt.s32.totalorder %s17, 3
      %p205 = pnand %p203, %p204
      %p206 = pneg %p205
      // Predicated region
      $region9: #{tpu_custom_call.1} parent=5 // pred_check
        _
      $region10: #{tpu_custom_call.1} parent=5 // pred_check_branch
        %208 = sbr.rel (%p205) target = $region12
      $region11: #{tpu_custom_call.1} parent=5 // pred_region
        %s209 = ssub.s32 %s17, 1
        // Predicated region
        $region13: #{tpu_custom_call.1} parent=11 // pred_check
          %p210 = pneg %p64
        $region14: #{tpu_custom_call.1} parent=11 // pred_check_branch
          %212 = sbr.rel (%p210) target = $region16
        $region15: #{tpu_custom_call.1} parent=11 // pred_region
          _
        $region16: #{tpu_custom_call.1} parent=11 // pred_fallthru
          _
        // Predicated region
        $region17: #{tpu_custom_call.1} parent=11 // pred_check
          %p213 = pneg %p85
        $region18: #{tpu_custom_call.1} parent=11 // pred_check_branch
          %215 = sbr.rel (%p213) target = $region20
        $region19: #{tpu_custom_call.1} parent=11 // pred_region
          _
        $region20: #{tpu_custom_call.1} parent=11 // pred_fallthru
          _
        // Predicated region
        $region21: #{tpu_custom_call.1} parent=11 // pred_check
          %p216 = pneg %p106
        $region22: #{tpu_custom_call.1} parent=11 // pred_check_branch
          %218 = sbr.rel (%p216) target = $region24
        $region23: #{tpu_custom_call.1} parent=11 // pred_region
          _
        $region24: #{tpu_custom_call.1} parent=11 // pred_fallthru
          _
        // Predicated region
        $region25: #{tpu_custom_call.1} parent=11 // pred_check
          %p219 = pneg %p127
        $region26: #{tpu_custom_call.1} parent=11 // pred_check_branch
          %221 = sbr.rel (%p219) target = $region28
        $region27: #{tpu_custom_call.1} parent=11 // pred_region
          _
        $region28: #{tpu_custom_call.1} parent=11 // pred_fallthru
          _
        // Predicated region
        $region29: #{tpu_custom_call.1} parent=11 // pred_check
          %p222 = pneg %p148
        $region30: #{tpu_custom_call.1} parent=11 // pred_check_branch
          %224 = sbr.rel (%p222) target = $region32
        $region31: #{tpu_custom_call.1} parent=11 // pred_region
          _
        $region32: #{tpu_custom_call.1} parent=11 // pred_fallthru
          _
        // Predicated region
        $region33: #{tpu_custom_call.1} parent=11 // pred_check
          %p225 = pneg %p169
        $region34: #{tpu_custom_call.1} parent=11 // pred_check_branch
          %227 = sbr.rel (%p225) target = $region36
        $region35: #{tpu_custom_call.1} parent=11 // pred_region
          _
        $region36: #{tpu_custom_call.1} parent=11 // pred_fallthru
          _
      $region12: #{tpu_custom_call.1} parent=5 // pred_fallthru
        _
      %p228 = scmp.lt.s32.totalorder %s17, 2
      // Predicated region
      $region37: #{tpu_custom_call.1} parent=5 // pred_check
        %p229 = pneg %p228
      $region38: #{tpu_custom_call.1} parent=5 // pred_check_branch
        %231 = sbr.rel (%p229) target = $region40
      $region39: #{tpu_custom_call.1} parent=5 // pred_region
        // Predicated region
        $region41: #{tpu_custom_call.1} parent=39 // pred_check
          %p232 = pneg %p37
        $region42: #{tpu_custom_call.1} parent=39 // pred_check_branch
          %234 = sbr.rel (%p232) target = $region44
        $region43: #{tpu_custom_call.1} parent=39 // pred_region
          %s235 = sand.u32 %s27, 1
          %s236 = sand.u32 %s27, 1
          %s237 = smul.addr %s236, 8
          %s238 = scalar_lea.vmem [#allocation3], %s237
          %s239 = smul.addr %s17, 4
          %s240 = scalar_lea.vmem %s0, %s239
          // Predicated region
          $region45: #{tpu_custom_call.1} parent=43 // pred_check
            _
          $region46: #{tpu_custom_call.1} parent=43 // pred_check_branch
            %242 = sbr.rel (0) target = $region48
          $region47: #{tpu_custom_call.1} parent=43 // pred_region
            // Predicated region
            $region49: #{tpu_custom_call.1} parent=47 // pred_check
              _
            $region50: #{tpu_custom_call.1} parent=47 // pred_check_branch
              %244 = sbr.rel target = $region52
            $region51: #{tpu_custom_call.1} parent=47 // pred_region
              // Predicated region
              $region64: #{tpu_custom_call.1} parent=51 // pred_check
                _
              $region65: #{tpu_custom_call.1} parent=51 // pred_check_branch
                %261 = sbr.rel (0) target = $region67
              $region66: #{tpu_custom_call.1} parent=51 // pred_region
                loop: start=0, step=1, limit=1
                $region68: #{tpu_custom_call.1} parent=66 // loop_pre_header
                  _
                $region69: #{tpu_custom_call.1} parent=66 // loop_header
                  %s263 = sphi 0, %s267
                  %p264 = scmp.ge.s32.totalorder %s263, 1
                  %s268 = sphi %s240, %s240
                  %s269 = sphi %s238, %s238
                $region70: #{tpu_custom_call.1} parent=66 // loop_header_branch
                  %266 = sbr.rel (%p264) target = $region74
                $region71: #{tpu_custom_call.1} parent=66 // loop_body
                  _
                $region72: #{tpu_custom_call.1} parent=66 // loop_footer
                  %s267 = sadd.s32 1, %s263
                $region73: #{tpu_custom_call.1} parent=66 // loop_footer_branch
                  %262 = sbr.rel target = $region69
                $region74: #{tpu_custom_call.1} parent=66 // loop_exit
                  _
                loop: start=0, step=1, limit=1
                $region75: #{tpu_custom_call.1} parent=66 // loop_pre_header
                  _
                $region76: #{tpu_custom_call.1} parent=66 // loop_header
                  %s272 = sphi 0, %s276
                  %p273 = scmp.ge.s32.totalorder %s272, 1
                  %s277 = sphi %s240, %s240
                  %s278 = sphi %s238, %s238
                $region77: #{tpu_custom_call.1} parent=66 // loop_header_branch
                  %275 = sbr.rel (%p273) target = $region81
                $region78: #{tpu_custom_call.1} parent=66 // loop_body
                  %v279 = vld [vmem:[%s277] sm:$0xf]
                  %280 = vst [vmem:[%s278] sm:$0xf] %v279
                  %v281 = vld [vmem:[%s277 + $0x8] sm:$0xf]
                  %282 = vst [vmem:[%s278 + $0x4] sm:$0xf] %v281
                $region79: #{tpu_custom_call.1} parent=66 // loop_footer
                  %s276 = sadd.s32 1, %s272
                $region80: #{tpu_custom_call.1} parent=66 // loop_footer_branch
                  %271 = sbr.rel target = $region76
                $region81: #{tpu_custom_call.1} parent=66 // loop_exit
                  _
              $region67: #{tpu_custom_call.1} parent=51 // pred_fallthru
                _
            $region52: #{tpu_custom_call.1} parent=47 // pred_fallthru
              _
            // Predicated region
            $region53: #{tpu_custom_call.1} parent=47 // pred_check
              _
            $region54: #{tpu_custom_call.1} parent=47 // pred_check_branch
              %246 = sbr.rel (0) target = $region56
            $region55: #{tpu_custom_call.1} parent=47 // pred_region
              loop: start=0, step=1, limit=1
              $region57: #{tpu_custom_call.1} parent=55 // loop_pre_header
                _
              $region58: #{tpu_custom_call.1} parent=55 // loop_header
                %s249 = sphi 0, %s253
                %p250 = scmp.ge.s32.totalorder %s249, 1
                %s254 = sphi %s240, %s240
                %s255 = sphi %s238, %s238
              $region59: #{tpu_custom_call.1} parent=55 // loop_header_branch
                %252 = sbr.rel (%p250) target = $region63
              $region60: #{tpu_custom_call.1} parent=55 // loop_body
                %v256 = vld [vmem:[%s254] sm:$0xf]
                %257 = vst [vmem:[%s255] sm:$0xf] %v256
                %v258 = vld [vmem:[%s254 + $0x8] sm:$0xf]
                %259 = vst [vmem:[%s255 + $0x4] sm:$0xf] %v258
              $region61: #{tpu_custom_call.1} parent=55 // loop_footer
                %s253 = sadd.s32 1, %s249
              $region62: #{tpu_custom_call.1} parent=55 // loop_footer_branch
                %248 = sbr.rel target = $region58
              $region63: #{tpu_custom_call.1} parent=55 // loop_exit
                _
            $region56: #{tpu_custom_call.1} parent=47 // pred_fallthru
              _
          $region48: #{tpu_custom_call.1} parent=43 // pred_fallthru
            _
          %283 = vnop
        $region44: #{tpu_custom_call.1} parent=39 // pred_fallthru
          _
      $region40: #{tpu_custom_call.1} parent=5 // pred_fallthru
        _
      %p284 = scmp.le.s32.totalorder 1, %s17
      %p285 = scmp.lt.s32.totalorder %s17, 3
      %p286 = pnand %p284, %p285
      %p287 = pneg %p286
      // Predicated region
      $region82: #{tpu_custom_call.1} parent=5 // pred_check
        _
      $region83: #{tpu_custom_call.1} parent=5 // pred_check_branch
        %289 = sbr.rel (%p286) target = $region85
      $region84: #{tpu_custom_call.1} parent=5 // pred_region
        %s290 = ssub.s32 %s17, 1
        %s291 = sand.u32 %s30, 1
        %s292 = sand.u32 %s30, 1
        %s293 = smul.addr %s292, 8
        %s294 = scalar_lea.vmem [#allocation3], %s293
        // Predicated region
        $region86: #{tpu_custom_call.1} parent=84 // pred_check
          %p295 = pneg %p43
        $region87: #{tpu_custom_call.1} parent=84 // pred_check_branch
          %297 = sbr.rel (%p295) target = $region89
        $region88: #{tpu_custom_call.1} parent=84 // pred_region
          _
        $region89: #{tpu_custom_call.1} parent=84 // pred_fallthru
          _
        %s298 = sand.u32 %s30, 1
        %s299 = sand.u32 %s30, 1
        %s300 = smul.addr %s299, 8
        %s301 = scalar_lea.vmem [#allocation3], %s300
        %p302 = pneg %p43
        %p303 = pneg %p40
        %p304 = pneg %p64
        %p305 = pneg %p61
        %p306 = pneg %p85
        %p307 = pneg %p82
        %p308 = pneg %p106
        %p309 = pneg %p103
        %p310 = pneg %p127
        %p311 = pneg %p124
        %p312 = pneg %p148
        %p313 = pneg %p145
        %p314 = pneg %p169
        %p315 = pneg %p166
        %p316 = pneg %p195
        %p317 = pneg %p192
        %s318 = sand.u32 %s182, 1
        %s319 = scalar_lea.sflag [#allocation5], %s318
        %s320 = sand.u32 %s182, 1
        %s321 = scalar_lea.vmem [#allocation4], %s320
        %v323 = vld [vmem:[%s294] sm:$0xf]
        %v324 = vld [vmem:[%s294 + $0x4] sm:$0xf]
        %v325 = vld [vmem:[%s1] sm:$0xf]
        %v326 = vld [vmem:[%s1 + $0x4] sm:$0xf]
        %v327 = vld [vmem:[%s1 + $0x8] sm:$0xf]
        %v328 = vld [vmem:[%s1 + $0xc] sm:$0xf]
        %v329 = vld [vmem:[%s2] sm:$0xff]
        %v330 = vld [vmem:[%s2 + $0x8] sm:$0xff]
        %v331 = vld [vmem:[%s2 + $0x10] sm:$0xff]
        %v332 = vld [vmem:[%s2 + $0x18] sm:$0xff]
        %334 = vset.pattern.permute.xlu0 0
        %335 = vperm.xlu0 %334, %v329
        %v336 = vpop.permute.xlu0 %335
        %339 = vset.pattern.permute.xlu0 0
        %340 = vperm.xlu0 %339, %v330
        %v341 = vpop.permute.xlu0 %340
        %344 = vset.pattern.permute.xlu0 0
        %345 = vperm.xlu0 %344, %v331
        %v346 = vpop.permute.xlu0 %345
        %349 = vset.pattern.permute.xlu0 0
        %350 = vperm.xlu0 %349, %v332
        %v351 = vpop.permute.xlu0 %350
        %v357 = vunpack.c.l.b16 %v325
        %v358 = vunpack.c.l.b16 %v326
        %v359 = vunpack.c.l.b16 %v327
        %v360 = vunpack.c.l.b16 %v328
        %v361 = vpack.c.b16 %v358, %v357
        %v362 = vpack.c.b16 %v360, %v359
        %v365 = vunpack.c.l.b16 %v323
        %v366 = vunpack.c.l.b16 %v324
        %v367 = vpack.c.b16 %v366, %v365
        %vm369 = vcmask 130048
        %v371 = vsel %vm369, %v361, 0
        %v374 = vsel %vm369, %v362, 0
        %376 = vmatprep.subr.bf16.mxu0 0
        %377 = vmatpush1.bf16.msra.mxu0 %v367
        %378 = vmatprep.subr.bf16.mxu0 0
        %379 = vmatpush1.bf16.msra.mxu0 0
        %380 = vmatprep.subr.bf16.mxu0 0
        %381 = vmatpush1.bf16.msra.mxu0 0
        %382 = vmatprep.subr.bf16.mxu0 0
        %383 = vmatpush1.bf16.msra.mxu0 0
        %384 = vmatprep.subr.bf16.mxu0 0
        %385 = vmatpush1.bf16.msra.mxu0 0
        %386 = vmatprep.subr.bf16.mxu0 0
        %387 = vmatpush1.bf16.msra.mxu0 0
        %388 = vmatprep.subr.bf16.mxu0 0
        %389 = vmatpush1.bf16.msra.mxu0 0
        %390 = vmatprep.subr.bf16.mxu0 0
        %391 = vmatpush1.bf16.msra.mxu0 0
        %392 = vmatprep.subr.bf16.mxu0 0
        %393 = vmatpush1.bf16.msra.mxu0 0
        %394 = vmatprep.subr.bf16.mxu0 0
        %395 = vmatpush1.bf16.msra.mxu0 0
        %396 = vmatprep.subr.bf16.mxu0 0
        %397 = vmatpush1.bf16.msra.mxu0 0
        %398 = vmatprep.subr.bf16.mxu0 0
        %399 = vmatpush1.bf16.msra.mxu0 0
        %400 = vmatprep.subr.bf16.mxu0 0
        %401 = vmatpush1.bf16.msra.mxu0 0
        %402 = vmatprep.subr.bf16.mxu0 0
        %403 = vmatpush1.bf16.msra.mxu0 0
        %404 = vmatprep.subr.bf16.mxu0 0
        %405 = vmatpush1.bf16.msra.mxu0 0
        %406 = vmatprep.subr.bf16.mxu0 0
        %407 = vmatpush1.bf16.msra.mxu0 0
        %408 = vmatprep.mubr.bf16.mxu0 0
        %409 = vmatmul.mubr.bf16.gmra.mrb[0].mxu0 %v371
        %v410 = vpop.f32.mrb[0].mxu0
        %v411 = vadd.f32 %v336, %v410
        %v412 = vpop.f32.mrb[0].mxu0
        %v413 = vpop.f32.mrb[0].mxu0
        %v414 = vadd.f32 %v341, %v413
        %v415 = vpop.f32.mrb[0].mxu0
        %416 = vmatprep.mubr.bf16.mxu0 0
        %417 = vmatmul.mubr.bf16.gmra.mrb[0].mxu0 %v374
        %v418 = vpop.f32.mrb[0].mxu0
        %v419 = vadd.f32 %v346, %v418
        %v420 = vpop.f32.mrb[0].mxu0
        %v421 = vpop.f32.mrb[0].mxu0
        %v422 = vadd.f32 %v351, %v421
        %v423 = vpop.f32.mrb[0].mxu0
        %424 = vdwg.mxu0
        %vm425 = vcmp.gt.f32.partialorder %v411, 0.0
        %vm426 = vcmp.gt.f32.partialorder %v414, 0.0
        %vm427 = vcmp.gt.f32.partialorder %v419, 0.0
        %vm428 = vcmp.gt.f32.partialorder %v422, 0.0
        %v429 = vmul.f32 %v411, 0.01
        %v430 = vmul.f32 %v414, 0.01
        %v431 = vmul.f32 %v419, 0.01
        %v432 = vmul.f32 %v422, 0.01
        %v433 = vsel %vm425, %v411, %v429
        %v434 = vsel %vm426, %v414, %v430
        %v435 = vsel %vm427, %v419, %v431
        %v436 = vsel %vm428, %v422, %v432
        %v437 = vld [vmem:[%s3] sm:$0xf]
        %v438 = vld [vmem:[%s3 + $0x4] sm:$0xf]
        %v439 = vld [vmem:[%s3 + $0x8] sm:$0xf]
        %v440 = vld [vmem:[%s3 + $0xc] sm:$0xf]
        %v441 = vpack.c.bf16 %v434, %v433
        %v442 = vpack.c.bf16 %v436, %v435
        %v443 = vld [vmem:[%s4] sm:$0xff]
        %v444 = vld [vmem:[%s4 + $0x8] sm:$0xff]
        %v445 = vld [vmem:[%s4 + $0x10] sm:$0xff]
        %v446 = vld [vmem:[%s4 + $0x18] sm:$0xff]
        %448 = vset.pattern.permute.xlu0 0
        %449 = vperm.xlu0 %448, %v443
        %v450 = vpop.permute.xlu0 %449
        %453 = vset.pattern.permute.xlu0 0
        %454 = vperm.xlu0 %453, %v444
        %v455 = vpop.permute.xlu0 %454
        %458 = vset.pattern.permute.xlu0 0
        %459 = vperm.xlu0 %458, %v445
        %v460 = vpop.permute.xlu0 %459
        %463 = vset.pattern.permute.xlu0 0
        %464 = vperm.xlu0 %463, %v446
        %v465 = vpop.permute.xlu0 %464
        %v471 = vunpack.c.l.b16 %v437
        %v472 = vunpack.c.l.b16 %v438
        %v473 = vunpack.c.l.b16 %v439
        %v474 = vunpack.c.l.b16 %v440
        %v475 = vpack.c.b16 %v472, %v471
        %v476 = vpack.c.b16 %v474, %v473
        %vm477 = vcmask 261120
        %v479 = vsel %vm477, %v475, 0
        %v482 = vsel %vm477, %v476, 0
        %484 = vmatprep.subr.bf16.mxu0 0
        %485 = vmatpush1.bf16.msra.mxu0 %v441
        %486 = vmatprep.subr.bf16.mxu0 0
        %487 = vmatpush1.bf16.msra.mxu0 %v442
        %488 = vmatprep.subr.bf16.mxu0 0
        %489 = vmatpush1.bf16.msra.mxu0 0
        %490 = vmatprep.subr.bf16.mxu0 0
        %491 = vmatpush1.bf16.msra.mxu0 0
        %492 = vmatprep.subr.bf16.mxu0 0
        %493 = vmatpush1.bf16.msra.mxu0 0
        %494 = vmatprep.subr.bf16.mxu0 0
        %495 = vmatpush1.bf16.msra.mxu0 0
        %496 = vmatprep.subr.bf16.mxu0 0
        %497 = vmatpush1.bf16.msra.mxu0 0
        %498 = vmatprep.subr.bf16.mxu0 0
        %499 = vmatpush1.bf16.msra.mxu0 0
        %500 = vmatprep.subr.bf16.mxu0 0
        %501 = vmatpush1.bf16.msra.mxu0 0
        %502 = vmatprep.subr.bf16.mxu0 0
        %503 = vmatpush1.bf16.msra.mxu0 0
        %504 = vmatprep.subr.bf16.mxu0 0
        %505 = vmatpush1.bf16.msra.mxu0 0
        %506 = vmatprep.subr.bf16.mxu0 0
        %507 = vmatpush1.bf16.msra.mxu0 0
        %508 = vmatprep.subr.bf16.mxu0 0
        %509 = vmatpush1.bf16.msra.mxu0 0
        %510 = vmatprep.subr.bf16.mxu0 0
        %511 = vmatpush1.bf16.msra.mxu0 0
        %512 = vmatprep.subr.bf16.mxu0 0
        %513 = vmatpush1.bf16.msra.mxu0 0
        %514 = vmatprep.subr.bf16.mxu0 0
        %515 = vmatpush1.bf16.msra.mxu0 0
        %516 = vmatprep.mubr.bf16.mxu0 0
        %517 = vmatmul.mubr.bf16.gmra.mrb[0].mxu0 %v479
        %v518 = vpop.f32.mrb[0].mxu0
        %v519 = vadd.f32 %v450, %v518
        %v520 = vpop.f32.mrb[0].mxu0
        %v521 = vpop.f32.mrb[0].mxu0
        %v522 = vadd.f32 %v455, %v521
        %v523 = vpop.f32.mrb[0].mxu0
        %524 = vmatprep.mubr.bf16.mxu0 0
        %525 = vmatmul.mubr.bf16.gmra.mrb[0].mxu0 %v482
        %v526 = vpop.f32.mrb[0].mxu0
        %v527 = vadd.f32 %v460, %v526
        %v528 = vpop.f32.mrb[0].mxu0
        %v529 = vpop.f32.mrb[0].mxu0
        %v530 = vadd.f32 %v465, %v529
        %v531 = vpop.f32.mrb[0].mxu0
        %532 = vdwg.mxu0
        %vm533 = vcmp.gt.f32.partialorder %v519, 0.0
        %vm534 = vcmp.gt.f32.partialorder %v522, 0.0
        %vm535 = vcmp.gt.f32.partialorder %v527, 0.0
        %vm536 = vcmp.gt.f32.partialorder %v530, 0.0
        %v537 = vmul.f32 %v519, 0.01
        %v538 = vmul.f32 %v522, 0.01
        %v539 = vmul.f32 %v527, 0.01
        %v540 = vmul.f32 %v530, 0.01
        %v541 = vsel %vm533, %v519, %v537
        %v542 = vsel %vm534, %v522, %v538
        %v543 = vsel %vm535, %v527, %v539
        %v544 = vsel %vm536, %v530, %v540
        %v545 = vld [vmem:[%s5] sm:$0xff]
        %v546 = vld [vmem:[%s5 + $0x8] sm:$0xff]
        %v547 = vld [vmem:[%s5 + $0x10] sm:$0xff]
        %v548 = vld [vmem:[%s5 + $0x18] sm:$0xff]
        %550 = vset.pattern.permute.xlu0 0
        %551 = vperm.xlu0 %550, %v545
        %v552 = vpop.permute.xlu0 %551
        %555 = vset.pattern.permute.xlu0 0
        %556 = vperm.xlu0 %555, %v546
        %v557 = vpop.permute.xlu0 %556
        %560 = vset.pattern.permute.xlu0 0
        %561 = vperm.xlu0 %560, %v547
        %v562 = vpop.permute.xlu0 %561
        %565 = vset.pattern.permute.xlu0 0
        %566 = vperm.xlu0 %565, %v548
        %v567 = vpop.permute.xlu0 %566
        %v569 = vmul.f32 %v541, %v552
        %v570 = vmul.f32 %v542, %v557
        %v571 = vmul.f32 %v543, %v562
        %v572 = vmul.f32 %v544, %v567
        %v573 = vadd.f32 %v569, %v570
        %v574 = vadd.f32 %v573, %v571
        %v575 = vadd.f32 %v574, %v572
        %v576 = vrot.slane %v575, 4
        %v577 = vadd.f32 %v575, %v576
        %v578 = vrot.slane %v577, 2
        %v579 = vadd.f32 %v577, %v578
        %v580 = vrot.slane %v579, 1
        %v581 = vadd.f32 %v579, %v580
        %s582 = sld [smem:[#allocation2]]
        %v583 = vstv %s582
        %v584 = vadd.f32 %v581, %v583
        %585 = vst [vmem:[%s321] sm:$0x1] %v584
        %s586 = sand.u32 %s182, 1
        %s587 = scalar_lea.sflag [#allocation5], %s586
        %s588 = sand.u32 %s182, 1
        %s589 = scalar_lea.vmem [#allocation4], %s588
        // Predicated region
        $region90: #{tpu_custom_call.1} parent=84 // pred_check
          %p590 = pneg %p192
        $region91: #{tpu_custom_call.1} parent=84 // pred_check_branch
          %592 = sbr.rel (%p590) target = $region93
        $region92: #{tpu_custom_call.1} parent=84 // pred_region
          %s594 = ssub.s32 16, 16
          %595 = vsyncadd %s587, %s594
          %s596 = smul.addr %s22, 16
          %s597 = scalar_lea.hbm %s7, %s596
          %s599 = sshll.u32 %s589, 4
          %s600 = int_to_ptr.vmem [resolvable:$true] %s599
          %602 = dma.vmem_to_hbm [thread:$0]  %s600, 16, %s597, %s587
        $region93: #{tpu_custom_call.1} parent=84 // pred_fallthru
          _
      $region85: #{tpu_custom_call.1} parent=5 // pred_fallthru
        _
      %p603 = scmp.le.s32.totalorder 2, %s17
      // Predicated region
      $region94: #{tpu_custom_call.1} parent=5 // pred_check
        %p604 = pneg %p603
      $region95: #{tpu_custom_call.1} parent=5 // pred_check_branch
        %606 = sbr.rel (%p604) target = $region97
      $region96: #{tpu_custom_call.1} parent=5 // pred_region
        %s607 = ssub.s32 %s17, 2
        // Predicated region
        $region98: #{tpu_custom_call.1} parent=96 // pred_check
          %p608 = pneg %p198
        $region99: #{tpu_custom_call.1} parent=96 // pred_check_branch
          %610 = sbr.rel (%p608) target = $region101
        $region100: #{tpu_custom_call.1} parent=96 // pred_region
          %s611 = sand.u32 %s183, 1
          %s612 = scalar_lea.sflag [#allocation5], %s611
          %s613 = sand.u32 %s183, 1
          %s614 = scalar_lea.vmem [#allocation4], %s613
          %615 = dma.done %s612, 16
        $region101: #{tpu_custom_call.1} parent=96 // pred_fallthru
          _
      $region97: #{tpu_custom_call.1} parent=5 // pred_fallthru
        _
    $region6: #{tpu_custom_call.1} parent=1 // loop_footer
      %s21 = sadd.s32 1, %s17
    $region7: #{tpu_custom_call.1} parent=1 // loop_footer_branch
      %16 = sbr.rel target = $region3
    $region8: #{tpu_custom_call.1} parent=1 // loop_exit
      _
    %616 = vsyncpa [#allocation5], 1
    %s617 = scalar_lea.sflag [#allocation5], 1
    %618 = vsyncpa %s617, 1

</llo_original>
